<compile_context>
chip_gen: v5e
topology: v5e:2x2
jax: 0.10.0
libtpu: 0.0.40
codegen_flags: <defaults>
</compile_context>

<pallas_src>
import functools  # noqa: F401

import jax
import jax.numpy as jnp
from jax import lax
from jax.experimental import pallas as pl
from jax.experimental.pallas import tpu as pltpu


_COMPILER_PARAMS = pltpu.CompilerParams(dimension_semantics=("arbitrary",))


# ----------------------------------------------------------------------------
# Branch 1: text + image.
#   text_feature = last_hidden_state[:, 0, :]          (CLS, sliced by wrapper)
#   img_feature  = max over the 49 patches
#   logits       = classifier(cat([text_feature, img_feature], 1))
#                = text_feature @ W_t + img_feature @ W_i + b
# ----------------------------------------------------------------------------
def _multimodal_head_kernel(cls_ref, img_ref, wt_ref, wi_ref, b_ref, o_ref):
    cls_tok = cls_ref[...]                                        # (B, H)
    img_max = jnp.max(img_ref[...], axis=1)                       # (B, C)
    o_ref[...] = (
        jnp.dot(cls_tok, wt_ref[...], preferred_element_type=jnp.float32)
        + jnp.dot(img_max, wi_ref[...], preferred_element_type=jnp.float32)
        + b_ref[...])


def multimodal_head(text_hidden, image_hidden, p):
    B, T, H = text_hidden.shape
    _, P, C = image_hidden.shape
    L = p["w_cls_txt"].shape[1]
    # CLS slice done at trace time (cheap strided read; avoids DMAing the whole
    # (B, T, H) text activation into VMEM just to keep its first row).
    cls_tok = text_hidden[:, 0, :]                                # (B, H)
    return pl.pallas_call(
        _multimodal_head_kernel,
        out_shape=jax.ShapeDtypeStruct((B, L), jnp.float32),
        grid=(1,),
        in_specs=[
            pl.BlockSpec((B, H), lambda i: (0, 0)),
            pl.BlockSpec((B, P, C), lambda i: (0, 0, 0)),
            pl.BlockSpec((H, L), lambda i: (0, 0)),
            pl.BlockSpec((C, L), lambda i: (0, 0)),
            pl.BlockSpec((1, L), lambda i: (0, 0)),
        ],
        out_specs=pl.BlockSpec((B, L), lambda i: (0, 0)),
        compiler_params=_COMPILER_PARAMS,
    )(cls_tok, image_hidden, p["w_cls_txt"], p["w_cls_img"], p["b_cls"])


# ----------------------------------------------------------------------------
# Branch 2: text only.
#   logits = text_classifier(linear(flatten(last_hidden_state)))
# Two chained matmuls fused into one kernel; the intermediate stays in VMEM.
# ----------------------------------------------------------------------------
def _text_only_head_kernel(flat_ref, wl_ref, bl_ref, wc_ref, bc_ref, o_ref):
    h = jnp.dot(flat_ref[...], wl_ref[...],
                preferred_element_type=jnp.float32) + bl_ref[...]
    o_ref[...] = jnp.dot(h, wc_ref[...],
                         preferred_element_type=jnp.float32) + bc_ref[...]


def text_only_head(text_hidden, p):
    B, T, H = text_hidden.shape
    flat = text_hidden.reshape(B, T * H)                          # nn.Flatten
    F = T * H
    Hl = p["w_lin"].shape[1]
    L = p["w_txt_cls"].shape[1]
    return pl.pallas_call(
        _text_only_head_kernel,
        out_shape=jax.ShapeDtypeStruct((B, L), jnp.float32),
        grid=(1,),
        in_specs=[
            pl.BlockSpec((B, F), lambda i: (0, 0)),
            pl.BlockSpec((F, Hl), lambda i: (0, 0)),
            pl.BlockSpec((1, Hl), lambda i: (0, 0)),
            pl.BlockSpec((Hl, L), lambda i: (0, 0)),
            pl.BlockSpec((1, L), lambda i: (0, 0)),
        ],
        out_specs=pl.BlockSpec((B, L), lambda i: (0, 0)),
        compiler_params=_COMPILER_PARAMS,
    )(flat, p["w_lin"], p["b_lin"], p["w_txt_cls"], p["b_txt_cls"])


# ----------------------------------------------------------------------------
# Branch 3: image only.
#   logits = image_classifier(max over 49 patches of last_hidden_state)
# ----------------------------------------------------------------------------
def _image_only_head_kernel(img_ref, w_ref, b_ref, o_ref):
    img_max = jnp.max(img_ref[...], axis=1)                       # (B, C)
    o_ref[...] = jnp.dot(img_max, w_ref[...],
                         preferred_element_type=jnp.float32) + b_ref[...]


def image_only_head(image_hidden, p):
    B, P, C = image_hidden.shape
    L = p["w_img_cls"].shape[1]
    return pl.pallas_call(
        _image_only_head_kernel,
        out_shape=jax.ShapeDtypeStruct((B, L), jnp.float32),
        grid=(1,),
        in_specs=[
            pl.BlockSpec((B, P, C), lambda i: (0, 0, 0)),
            pl.BlockSpec((C, L), lambda i: (0, 0)),
            pl.BlockSpec((1, L), lambda i: (0, 0)),
        ],
        out_specs=pl.BlockSpec((B, L), lambda i: (0, 0)),
        compiler_params=_COMPILER_PARAMS,
    )(image_hidden, p["w_img_cls"], p["b_img_cls"])


# ----------------------------------------------------------------------------
# Forward dispatch, mirroring BertResNetModel.forward(text, image).
# ----------------------------------------------------------------------------
def bert_resnet_forward(params, text_hidden=None, image_hidden=None):
    # TODO(synk): the pretrained BERT (AutoModel) and ResNet-50 backbones are
    # not re-implemented; `text_hidden` stands in for
    # text_encoder(**text).last_hidden_state (B, T, hidden) and `image_hidden`
    # for visual_encoder(image).last_hidden_state.view(-1, 49, 2048).
    if text_hidden is not None and image_hidden is not None:
        return multimodal_head(text_hidden, image_hidden, params)
    elif text_hidden is not None:
        return text_only_head(text_hidden, params)
    else:
        return image_only_head(image_hidden, params)


# ----------------------------------------------------------------------------
# Deterministic synthetic parameters (PyTorch Linear weights transposed).
# ----------------------------------------------------------------------------
def init_params(key, hidden, image_dim, seq_len, num_labels):
    ks = jax.random.split(key, 9)

    def w(k, shape, scale=0.05):
        return (scale * jax.random.normal(k, shape)).astype(jnp.float32)

    return {
        # classifier = Linear(hidden + image_dim, num_labels); weight split so
        # that cat([text, image]) @ W == text @ W_t + image @ W_i.
        "w_cls_txt": w(ks[0], (hidden, num_labels)),
        "w_cls_img": w(ks[1], (image_dim, num_labels)),
        "b_cls": w(ks[2], (1, num_labels)),
        # linear = Linear(seq_len * hidden, hidden)   (49152 -> 768 at real scale)
        "w_lin": w(ks[3], (seq_len * hidden, hidden)),
        "b_lin": w(ks[4], (1, hidden)),
        # text_classifier = Linear(hidden, num_labels)
        "w_txt_cls": w(ks[5], (hidden, num_labels)),
        "b_txt_cls": w(ks[6], (1, num_labels)),
        # image_classifier = Linear(image_dim, num_labels)
        "w_img_cls": w(ks[7], (image_dim, num_labels)),
        "b_img_cls": w(ks[8], (1, num_labels)),
    }


# ----------------------------------------------------------------------------
# Pure-JAX references (for a tolerance check of the Pallas kernels).
# ----------------------------------------------------------------------------
_HI = lax.Precision.HIGHEST


def _ref_multimodal(text_hidden, image_hidden, p):
    cls_tok = text_hidden[:, 0, :]
    img_max = jnp.max(image_hidden, axis=1)
    feat = jnp.concatenate([cls_tok, img_max], axis=1)
    w = jnp.concatenate([p["w_cls_txt"], p["w_cls_img"]], axis=0)
    return jnp.dot(feat, w, precision=_HI) + p["b_cls"]


def _ref_text_only(text_hidden, p):
    B = text_hidden.shape[0]
    flat = text_hidden.reshape(B, -1)
    h = jnp.dot(flat, p["w_lin"], precision=_HI) + p["b_lin"]
    return jnp.dot(h, p["w_txt_cls"], precision=_HI) + p["b_txt_cls"]


def _ref_image_only(image_hidden, p):
    img_max = jnp.max(image_hidden, axis=1)
    return jnp.dot(img_max, p["w_img_cls"], precision=_HI) + p["b_img_cls"]


if __name__ == "__main__":
    B, T, H, P, C, L = 2, 8, 32, 49, 64, 4   # batch, tokens, hidden, patches, img_dim, labels

    key = jax.random.PRNGKey(0)
    k_txt, k_img, k_par = jax.random.split(key, 3)

    text_hidden = jax.random.normal(k_txt, (B, T, H), jnp.float32)
    image_hidden = jax.random.normal(k_img, (B, P, C), jnp.float32)
    params = init_params(k_par, H, C, T, L)

    out_mm = bert_resnet_forward(params, text_hidden=text_hidden, image_hidden=image_hidden)
    out_txt = bert_resnet_forward(params, text_hidden=text_hidden, image_hidden=None)
    out_img = bert_resnet_forward(params, text_hidden=None, image_hidden=image_hidden)
    out_mm, out_txt, out_img = jax.block_until_ready((out_mm, out_txt, out_img))

    assert out_mm.shape == (B, L), out_mm.shape
    assert out_txt.shape == (B, L), out_txt.shape
    assert out_img.shape == (B, L), out_img.shape
    for o in (out_mm, out_txt, out_img):
        assert bool(jnp.all(jnp.isfinite(o)))

    # Numerical check against pure-JAX references.
    ref_mm = _ref_multimodal(text_hidden, image_hidden, params)
    ref_txt = _ref_text_only(text_hidden, params)
    ref_img = _ref_image_only(image_hidden, params)
    assert bool(jnp.allclose(out_mm, ref_mm, atol=3e-2, rtol=3e-2))
    assert bool(jnp.allclose(out_txt, ref_txt, atol=3e-2, rtol=3e-2))
    assert bool(jnp.allclose(out_img, ref_img, atol=3e-2, rtol=3e-2))

    print("KERNEL_OK")
</pallas_src>

<mosaic_0001>
module attributes {stable_mosaic.version = 11 : i64} {
  func.func @_multimodal_head_kernel(%arg0: i32, %arg1: memref<2x32xf32, #tpu.memory_space<vmem>>, %arg2: memref<2x49x64xf32, #tpu.memory_space<vmem>>, %arg3: memref<32x4xf32, #tpu.memory_space<vmem>>, %arg4: memref<64x4xf32, #tpu.memory_space<vmem>>, %arg5: memref<1x4xf32, #tpu.memory_space<vmem>>, %arg6: memref<2x4xf32, #tpu.memory_space<vmem>>) attributes {dimension_semantics = [#tpu.dimension_semantics<arbitrary>], iteration_bounds = array<i64: 1>, scalar_prefetch = 0 : i64, scratch_operands = 0 : i64, tpu.core_type = #tpu.core_type<tc>, window_params = [{pipeline_mode = #tpu.pipeline_mode<synchronous>, transform_indices = @transform_0, window_bounds = array<i64: 2, 32>}, {pipeline_mode = #tpu.pipeline_mode<synchronous>, transform_indices = @transform_1, window_bounds = array<i64: 2, 49, 64>}, {pipeline_mode = #tpu.pipeline_mode<synchronous>, transform_indices = @transform_2, window_bounds = array<i64: 32, 4>}, {pipeline_mode = #tpu.pipeline_mode<synchronous>, transform_indices = @transform_3, window_bounds = array<i64: 64, 4>}, {pipeline_mode = #tpu.pipeline_mode<synchronous>, transform_indices = @transform_4, window_bounds = array<i64: 1, 4>}, {pipeline_mode = #tpu.pipeline_mode<synchronous>, transform_indices = @transform_5, window_bounds = array<i64: 2, 4>}]} {
    %c0 = arith.constant 0 : index
    %c0_0 = arith.constant 0 : index
    %0 = vector.load %arg1[%c0, %c0_0] : memref<2x32xf32, #tpu.memory_space<vmem>>, vector<2x32xf32>
    %c0_1 = arith.constant 0 : index
    %c0_2 = arith.constant 0 : index
    %c0_3 = arith.constant 0 : index
    %1 = vector.load %arg2[%c0_1, %c0_2, %c0_3] : memref<2x49x64xf32, #tpu.memory_space<vmem>>, vector<2x49x64xf32>
    %cst = arith.constant dense<0xFF800000> : vector<2x64xf32>
    %2 = vector.multi_reduction <maximumf>, %1, %cst [1] : vector<2x49x64xf32> to vector<2x64xf32>
    %c0_4 = arith.constant 0 : index
    %c0_5 = arith.constant 0 : index
    %3 = vector.load %arg3[%c0_4, %c0_5] : memref<32x4xf32, #tpu.memory_space<vmem>>, vector<32x4xf32>
    %cst_6 = arith.constant dense<0.000000e+00> : vector<2x4xf32>
    %4 = tpu.matmul %0, %3, %cst_6 {dimension_numbers = #tpu.dot_dimension_numbers<[1], [0], [0], [1], [0, 0, 1, 1], [], []>} : vector<2x32xf32>, vector<32x4xf32>, vector<2x4xf32> -> vector<2x4xf32>
    %c0_7 = arith.constant 0 : index
    %c0_8 = arith.constant 0 : index
    %5 = vector.load %arg4[%c0_7, %c0_8] : memref<64x4xf32, #tpu.memory_space<vmem>>, vector<64x4xf32>
    %cst_9 = arith.constant dense<0.000000e+00> : vector<2x4xf32>
    %6 = tpu.matmul %2, %5, %cst_9 {dimension_numbers = #tpu.dot_dimension_numbers<[1], [0], [0], [1], [0, 0, 1, 1], [], []>} : vector<2x64xf32>, vector<64x4xf32>, vector<2x4xf32> -> vector<2x4xf32>
    %7 = arith.addf %4, %6 : vector<2x4xf32>
    %c0_10 = arith.constant 0 : index
    %c0_11 = arith.constant 0 : index
    %8 = vector.load %arg5[%c0_10, %c0_11] : memref<1x4xf32, #tpu.memory_space<vmem>>, vector<1x4xf32>
    %9 = vector.broadcast %8 : vector<1x4xf32> to vector<2x4xf32>
    %10 = arith.addf %7, %9 : vector<2x4xf32>
    %c0_12 = arith.constant 0 : index
    %c0_13 = arith.constant 0 : index
    %11 = vector.load %arg6[%c0_12, %c0_13] : memref<2x4xf32, #tpu.memory_space<vmem>>, vector<2x4xf32>
    tpu.vector_store %arg6[%c0_12, %c0_13], %10 {strides = array<i32>} : memref<2x4xf32, #tpu.memory_space<vmem>>, vector<2x4xf32>,
    return
  }
  func.func @transform_0(%arg0: i32) -> (i32, i32) {
    %c0_i32 = arith.constant 0 : i32
    %c0_i32_0 = arith.constant 0 : i32
    %c0_i32_1 = arith.constant 0 : i32
    return %c0_i32, %c0_i32_0 : i32, i32
  }
  func.func @transform_1(%arg0: i32) -> (i32, i32, i32) {
    %c0_i32 = arith.constant 0 : i32
    %c0_i32_0 = arith.constant 0 : i32
    %c0_i32_1 = arith.constant 0 : i32
    %c0_i32_2 = arith.constant 0 : i32
    return %c0_i32, %c0_i32_0, %c0_i32_1 : i32, i32, i32
  }
  func.func @transform_2(%arg0: i32) -> (i32, i32) {
    %c0_i32 = arith.constant 0 : i32
    %c0_i32_0 = arith.constant 0 : i32
    %c0_i32_1 = arith.constant 0 : i32
    return %c0_i32, %c0_i32_0 : i32, i32
  }
  func.func @transform_3(%arg0: i32) -> (i32, i32) {
    %c0_i32 = arith.constant 0 : i32
    %c0_i32_0 = arith.constant 0 : i32
    %c0_i32_1 = arith.constant 0 : i32
    return %c0_i32, %c0_i32_0 : i32, i32
  }
  func.func @transform_4(%arg0: i32) -> (i32, i32) {
    %c0_i32 = arith.constant 0 : i32
    %c0_i32_0 = arith.constant 0 : i32
    %c0_i32_1 = arith.constant 0 : i32
    return %c0_i32, %c0_i32_0 : i32, i32
  }
  func.func @transform_5(%arg0: i32) -> (i32, i32) {
    %c0_i32 = arith.constant 0 : i32
    %c0_i32_0 = arith.constant 0 : i32
    %c0_i32_1 = arith.constant 0 : i32
    return %c0_i32, %c0_i32_0 : i32, i32
  }
}

</mosaic_0001>

<llo_original>
// kernel: tpu_custom_call.1
$region0: #{tpu_custom_call.1}
  #allocation0 [shape = 'u32[]', space=smem, size = 0x4, offset = 0x4, fixed_abs, tag = 'smem constant byte address 0x4 - core index']
  #allocation1 [shape = 'u32[72,128]{1,0:T(1,128)}', space=vmem, size = 0x9000, scoped, tag = 'internal scratch']
  %s0 = inlined_call_operand.vmem [shape: f32[2,32], index: 0, kind: input, shape index: {}]
  %s1 = inlined_call_operand.vmem [shape: f32[2,49,64], index: 1, kind: input, shape index: {}]
  %s2 = inlined_call_operand.vmem [shape: f32[32,4], index: 2, kind: input, shape index: {}]
  %s3 = inlined_call_operand.vmem [shape: f32[64,4], index: 3, kind: input, shape index: {}]
  %s4 = inlined_call_operand.vmem [shape: f32[1,4], index: 4, kind: input, shape index: {}]
  %s5 = inlined_call_operand.hbm [shape: f32[2,4], index: 5, kind: output, shape index: {}]
  %s6 = sld [smem:[#allocation0]]
  $region30: #{tpu_custom_call.1} parent=0
    _
  %s8 = ssub.s32 1, %s6
  %s9 = scalar_select 0, %s8, %s6
  $region1: #{tpu_custom_call.1} parent=0
    #allocation2 [shape = 'u8[1024]{0}', space=vmem, size = 0x400, scoped, tag = 'output window, operand 0, single buffered']
    #allocation3 [shape = 's32[1]{0}', space=sflag, size = 0x4, scoped, tag = 'scoped memory for tpu_custom_call.1']
    %10 = vsyncpa [#allocation3], 0
    // Predicated region
    $region2: #{tpu_custom_call.1} parent=1 // pred_check
      _
    $region3: #{tpu_custom_call.1} parent=1 // pred_check_branch
      %12 = sbr.rel (0) target = $region5
    $region4: #{tpu_custom_call.1} parent=1 // pred_region
      _
    $region5: #{tpu_custom_call.1} parent=1 // pred_fallthru
      _
    // Predicated region
    $region6: #{tpu_custom_call.1} parent=1 // pred_check
      _
    $region7: #{tpu_custom_call.1} parent=1 // pred_check_branch
      %14 = sbr.rel (0) target = $region9
    $region8: #{tpu_custom_call.1} parent=1 // pred_region
      _
    $region9: #{tpu_custom_call.1} parent=1 // pred_fallthru
      _
    // Predicated region
    $region10: #{tpu_custom_call.1} parent=1 // pred_check
      _
    $region11: #{tpu_custom_call.1} parent=1 // pred_check_branch
      %16 = sbr.rel (0) target = $region13
    $region12: #{tpu_custom_call.1} parent=1 // pred_region
      _
    $region13: #{tpu_custom_call.1} parent=1 // pred_fallthru
      _
    // Predicated region
    $region14: #{tpu_custom_call.1} parent=1 // pred_check
      _
    $region15: #{tpu_custom_call.1} parent=1 // pred_check_branch
      %18 = sbr.rel (0) target = $region17
    $region16: #{tpu_custom_call.1} parent=1 // pred_region
      _
    $region17: #{tpu_custom_call.1} parent=1 // pred_fallthru
      _
    // Predicated region
    $region18: #{tpu_custom_call.1} parent=1 // pred_check
      _
    $region19: #{tpu_custom_call.1} parent=1 // pred_check_branch
      %20 = sbr.rel (0) target = $region21
    $region20: #{tpu_custom_call.1} parent=1 // pred_region
      _
    $region21: #{tpu_custom_call.1} parent=1 // pred_fallthru
      _
    %v21 = vld [vmem:[%s0] sm:$0x3]
    %v22 = vld [vmem:[%s1] sm:$0xff]
    %v23 = vld [vmem:[%s1 + $0x8] sm:$0xff]
    %v24 = vld [vmem:[%s1 + $0x10] sm:$0xff]
    %v25 = vld [vmem:[%s1 + $0x18] sm:$0xff]
    %v26 = vld [vmem:[%s1 + $0x20] sm:$0xff]
    %v27 = vld [vmem:[%s1 + $0x28] sm:$0xff]
    %v28 = vld [vmem:[%s1 + $0x30] sm:$0x1]
    %v29 = vld [vmem:[%s1 + $0x38] sm:$0xff]
    %v30 = vld [vmem:[%s1 + $0x40] sm:$0xff]
    %v31 = vld [vmem:[%s1 + $0x48] sm:$0xff]
    %v32 = vld [vmem:[%s1 + $0x50] sm:$0xff]
    %v33 = vld [vmem:[%s1 + $0x58] sm:$0xff]
    %v34 = vld [vmem:[%s1 + $0x60] sm:$0xff]
    %v35 = vld [vmem:[%s1 + $0x68] sm:$0x1]
    %vm36 = vcmask 523264
    %v37 = vsel %vm36, %v22, -inf
    %v38 = vsel %vm36, %v23, -inf
    %v39 = vsel %vm36, %v24, -inf
    %v40 = vmax.f32 %v37, %v39
    %v41 = vsel %vm36, %v25, -inf
    %v42 = vmax.f32 %v38, %v41
    %v43 = vsel %vm36, %v26, -inf
    %v44 = vmax.f32 %v40, %v43
    %v45 = vsel %vm36, %v27, -inf
    %v46 = vmax.f32 %v42, %v45
    %vm47 = vcmask 516096
    %v48 = vsel %vm47, %v28, -inf
    %v49 = vmax.f32 %v44, %v48
    %v50 = vmax.f32 %v49, %v46
    %v51 = vrot.slane %v50, 4
    %v52 = vmax.f32 %v50, %v51
    %v53 = vrot.slane %v52, 2
    %v54 = vmax.f32 %v52, %v53
    %v55 = vrot.slane %v54, 1
    %v56 = vmax.f32 %v54, %v55
    %v57 = vsel %vm36, %v29, -inf
    %v58 = vsel %vm36, %v30, -inf
    %v59 = vsel %vm36, %v31, -inf
    %v60 = vmax.f32 %v57, %v59
    %v61 = vsel %vm36, %v32, -inf
    %v62 = vmax.f32 %v58, %v61
    %v63 = vsel %vm36, %v33, -inf
    %v64 = vmax.f32 %v60, %v63
    %v65 = vsel %vm36, %v34, -inf
    %v66 = vmax.f32 %v62, %v65
    %v67 = vsel %vm47, %v35, -inf
    %v68 = vmax.f32 %v64, %v67
    %v69 = vmax.f32 %v68, %v66
    %v70 = vrot.slane %v69, 4
    %v71 = vmax.f32 %v69, %v70
    %v72 = vrot.slane %v71, 2
    %v73 = vmax.f32 %v71, %v72
    %v74 = vrot.slane %v73, 1
    %v75 = vmax.f32 %v73, %v74
    %v76 = vld [vmem:[%s2] sm:$0xff]
    %v77 = vld [vmem:[%s2 + $0x8] sm:$0xff]
    %v78 = vld [vmem:[%s2 + $0x10] sm:$0xff]
    %v79 = vld [vmem:[%s2 + $0x18] sm:$0xff]
    %v80 = vld [vmem:[%s3] sm:$0xff]
    %v81 = vld [vmem:[%s3 + $0x8] sm:$0xff]
    %v82 = vld [vmem:[%s3 + $0x10] sm:$0xff]
    %v83 = vld [vmem:[%s3 + $0x18] sm:$0xff]
    %v84 = vld [vmem:[%s3 + $0x20] sm:$0xff]
    %v85 = vld [vmem:[%s3 + $0x28] sm:$0xff]
    %v86 = vld [vmem:[%s3 + $0x30] sm:$0xff]
    %v87 = vld [vmem:[%s3 + $0x38] sm:$0xff]
    %vm90 = vcmask 1041409
    %v91 = vsel %vm90, %v75, %v56
    %v92 = vsel %vm36, %v91, 0
    %94 = vmatpush.msra.mxu0 0.0
    %95 = vmatpush.msra.mxu0 0.0
    %96 = vmatpush.msra.mxu0 0.0
    %97 = vmatpush.msra.mxu0 0.0
    %98 = vmatpush.msra.mxu0 0.0
    %99 = vmatpush.msra.mxu0 0.0
    %100 = vmatpush.msra.mxu0 0.0
    %101 = vmatpush.msra.mxu0 0.0
    %102 = vmatpush.msra.mxu0 %v87
    %103 = vmatpush.msra.mxu0 %v86
    %104 = vmatpush.msra.mxu0 %v85
    %105 = vmatpush.msra.mxu0 %v84
    %106 = vmatpush.msra.mxu0 %v83
    %107 = vmatpush.msra.mxu0 %v82
    %108 = vmatpush.msra.mxu0 %v81
    %109 = vmatpush.msra.mxu0 %v80
    %110 = vmatmul.f32.gmra.mxu0 %v92
    %v111 = vpop.f32.mrf.mxu0
    %v112 = vadd.f32 0.0, %v111
    %113 = vdwg.mxu0
    %vm114 = vcmask 261120
    %v116 = vsel %vm114, %v21, 0
    %118 = vmatpush.msra.mxu0 0.0
    %119 = vmatpush.msra.mxu0 0.0
    %120 = vmatpush.msra.mxu0 0.0
    %121 = vmatpush.msra.mxu0 0.0
    %122 = vmatpush.msra.mxu0 0.0
    %123 = vmatpush.msra.mxu0 0.0
    %124 = vmatpush.msra.mxu0 0.0
    %125 = vmatpush.msra.mxu0 0.0
    %126 = vmatpush.msra.mxu0 0.0
    %127 = vmatpush.msra.mxu0 0.0
    %128 = vmatpush.msra.mxu0 0.0
    %129 = vmatpush.msra.mxu0 0.0
    %130 = vmatpush.msra.mxu0 %v79
    %131 = vmatpush.msra.mxu0 %v78
    %132 = vmatpush.msra.mxu0 %v77
    %133 = vmatpush.msra.mxu0 %v76
    %134 = vmatmul.f32.gmra.mxu0 %v116
    %v135 = vpop.f32.mrf.mxu0
    %v136 = vadd.f32 %v112, %v135
    %137 = vdwg.mxu0
    %v138 = vld [vmem:[%s4] sm:$0x1]
    %v140 = vperm.slane %v138, 0
    %v142 = vadd.f32 %v136, %v140
    %vm143 = vcmask 25600
    %144 = vst.msk [vmem:[#allocation2] sm:$0x3] %vm143, %v142
    // Predicated region
    $region22: #{tpu_custom_call.1} parent=1 // pred_check
      _
    $region23: #{tpu_custom_call.1} parent=1 // pred_check_branch
      %146 = sbr.rel (0) target = $region25
    $region24: #{tpu_custom_call.1} parent=1 // pred_region
      %148 = vsyncadd [#allocation3], 0
      %s150 = sshll.u32 [#allocation2], 4
      %s151 = int_to_ptr.vmem [resolvable:$true] %s150
      %s152 = sshll.u32 %s5, 4
      %s153 = int_to_ptr.hbm [resolvable:$true] %s152
      %155 = dma.vmem_to_hbm [thread:$0]  %s151, 32, %s153, [#allocation3]
    $region25: #{tpu_custom_call.1} parent=1 // pred_fallthru
      _
    // Predicated region
    $region26: #{tpu_custom_call.1} parent=1 // pred_check
      _
    $region27: #{tpu_custom_call.1} parent=1 // pred_check_branch
      %157 = sbr.rel (0) target = $region29
    $region28: #{tpu_custom_call.1} parent=1 // pred_region
      %159 = dma.done [#allocation3], 32
    $region29: #{tpu_custom_call.1} parent=1 // pred_fallthru
      _
    %160 = vsyncpa [#allocation3], 1

</llo_original>
